<compile_context>
chip_gen: v7x
topology: tpu7x:2x2x1
jax: 0.10.0
libtpu: 0.0.40
codegen_flags: <defaults>
</compile_context>

<pallas_src>
import functools

import jax
import jax.numpy as jnp
from jax.experimental import pallas as pl
from jax.experimental.pallas import tpu as pltpu


_NEG_FILL = -1e30   # finite "-inf": never wins a row max, exp() underflows to 0


def _round_up(x, m):
    return ((x + m - 1) // m) * m


def _pick_row_tile(n, c_pad, itemsize, target_block_bytes=2 << 20):
    """Rows per grid step: big enough to amortize the ~0.35us per-step cost,
    small enough that inputs + f32 temporaries stay well inside scoped VMEM on
    every TPU generation (including v7x's smaller 64 MiB VMEM)."""
    rows = (target_block_bytes // (c_pad * itemsize)) // 8 * 8
    rows = int(max(8, min(rows, 2048)))
    if rows >= 128:
        rows = (rows // 128) * 128                 # keep output slab lane-aligned
        rows = min(rows, _round_up(n, 128))
    else:
        rows = min(rows, _round_up(n, 8))          # huge-C corner case
    return rows


def _kd_kl_div_kernel(pred_ref, soft_ref, out_ref, *, inv_temp, t_sq_over_c,
                      num_classes):
    """One (TN, C_pad) logits tile -> (1, 8, TN) lane-dense per-row KD losses."""
    p = pred_ref[...].astype(jnp.float32) * inv_temp     # student logits / T
    s = soft_ref[...].astype(jnp.float32) * inv_temp     # teacher logits / T
    c_pad = p.shape[-1]

    # Numerically-stable softmax pieces.  Padded lanes/rows hold a huge
    # negative fill, so they never win the row max and their exp() is exactly 0.
    p_shift = p - jnp.max(p, axis=-1, keepdims=True)
    s_shift = s - jnp.max(s, axis=-1, keepdims=True)
    p_exp = jnp.exp(p_shift)
    s_exp = jnp.exp(s_shift)
    p_sum = jnp.sum(p_exp, axis=-1, keepdims=True)       # (TN, 1)
    s_sum = jnp.sum(s_exp, axis=-1, keepdims=True)       # (TN, 1)

    # target * (log target - log pred) with a single per-row reciprocal
    # (no per-element divide).
    target = s_exp * pl.reciprocal(s_sum, approx=False)                  # (TN, C)
    log_diff = (s_shift - p_shift) + (jnp.log(p_sum) - jnp.log(s_sum))   # (TN, C)
    kl = target * log_diff

    # Masked, lane-dense per-row reduction on the idle MXU:
    #   (8, C_pad) @ (TN, C_pad)^T -> (8, TN); all 8 result rows identical.
    lane = jax.lax.broadcasted_iota(jnp.int32, (8, c_pad), 1)
    mask = (lane < num_classes).astype(jnp.float32)      # 1 for real classes
    dn = (((1,), (1,)), ((), ()))                        # contract class dim
    row_sum = jax.lax.dot_general(mask, kl, dn,
                                  preferred_element_type=jnp.float32)

    out_ref[0] = row_sum * t_sq_over_c                   # T^2 * mean over real C


def knowledge_distillation_kl_div_loss(pred, soft_label, T=10):
    """Per-sample KD loss, shape (N,). Mirrors mmdet's element-wise function."""
    assert pred.shape == soft_label.shape and pred.ndim == 2
    N, C = pred.shape
    # detach_target=True in the reference.
    soft_label = jax.lax.stop_gradient(soft_label)
    # TODO(synk): backward pass (custom VJP) not implemented; forward only.

    c_pad = _round_up(C, 128)
    isz_p = jnp.dtype(pred.dtype).itemsize
    isz_s = jnp.dtype(soft_label.dtype).itemsize
    row_tile = _pick_row_tile(N, c_pad, max(isz_p, isz_s))
    n_pad = _round_up(N, row_tile)
    num_tiles = n_pad // row_tile

    if (n_pad, c_pad) != (N, C):
        pad = ((0, n_pad - N), (0, c_pad - C))
        pred = jnp.pad(pred, pad, constant_values=_NEG_FILL)
        soft_label = jnp.pad(soft_label, pad, constant_values=_NEG_FILL)

    kernel = functools.partial(
        _kd_kl_div_kernel,
        inv_temp=1.0 / float(T),
        t_sq_over_c=float(T) * float(T) / float(C),
        num_classes=C)

    # 2 pipeline buffers per input + f32 temporaries + double-buffered output.
    vmem_bytes = (2 * row_tile * c_pad * (isz_p + isz_s)
                  + 12 * row_tile * c_pad * 4
                  + 2 * 8 * row_tile * 4
                  + (4 << 20))
    vmem_limit = int(min(max(vmem_bytes, 32 << 20), 100 << 20))

    out = pl.pallas_call(
        kernel,
        out_shape=jax.ShapeDtypeStruct((num_tiles, 8, row_tile), jnp.float32),
        grid_spec=pltpu.PrefetchScalarGridSpec(
            num_scalar_prefetch=0,
            grid=(num_tiles,),
            in_specs=[
                pl.BlockSpec((row_tile, c_pad), lambda i: (i, 0)),
                pl.BlockSpec((row_tile, c_pad), lambda i: (i, 0)),
            ],
            out_specs=pl.BlockSpec((1, 8, row_tile), lambda i: (i, 0, 0)),
        ),
        compiler_params=pltpu.CompilerParams(
            dimension_semantics=("parallel",),
            vmem_limit_bytes=vmem_limit),
    )(pred, soft_label)

    # Keep row 0 of each lane-dense slab, drop padded rows.
    return out[:, 0, :].reshape(-1)[:N]


class KnowledgeDistillationKLDivLoss:
    """JAX/Pallas port of mmdet's KnowledgeDistillationKLDivLoss (forward)."""

    def __init__(self, reduction='mean', loss_weight=1.0, T=10):
        assert T >= 1
        self.reduction = reduction
        self.loss_weight = loss_weight
        self.T = T

    def __call__(self, pred, soft_label, weight=None, avg_factor=None,
                 reduction_override=None):
        assert reduction_override in (None, 'none', 'mean', 'sum')
        reduction = reduction_override if reduction_override else self.reduction

        loss = knowledge_distillation_kl_div_loss(pred, soft_label, T=self.T)

        # ---- @weighted_loss / weight_reduce_loss semantics (plain-JAX glue) ----
        if weight is not None:
            loss = loss * weight
        if avg_factor is None:
            if reduction == 'mean':
                loss = jnp.mean(loss)
            elif reduction == 'sum':
                loss = jnp.sum(loss)
        else:
            if reduction == 'mean':
                loss = jnp.sum(loss) / avg_factor
            elif reduction != 'none':
                raise ValueError('avg_factor can not be used with reduction="sum"')
        return self.loss_weight * loss


def _reference_per_sample(pred, soft_label, T):
    """Pure-JAX per-sample reference."""
    p = pred.astype(jnp.float32) / T
    s = soft_label.astype(jnp.float32) / T
    target = jax.nn.softmax(s, axis=1)
    log_pred = jax.nn.log_softmax(p, axis=1)
    log_target = jax.nn.log_softmax(s, axis=1)
    kl = target * (log_target - log_pred)
    return jnp.mean(kl, axis=1) * (T * T)


if __name__ == "__main__":
    key = jax.random.PRNGKey(0)
    k1, k2, k3 = jax.random.split(key, 3)

    # Small detection-style shapes: 50 proposals, 80 classes + background.
    # (N deliberately not a multiple of the row tile, C not a multiple of 128,
    #  to exercise the padding/masking paths.)
    N, C = 50, 81
    pred = jax.random.normal(k1, (N, C), dtype=jnp.float32) * 3.0
    soft = jax.random.normal(k2, (N, C), dtype=jnp.float32) * 3.0

    loss_mod = KnowledgeDistillationKLDivLoss(reduction='mean',
                                              loss_weight=1.0, T=10)

    ref_rows = _reference_per_sample(pred, soft, T=10)

    # Tolerances leave headroom for the MXU's f32 matmul precision mode used
    # for the final row reduction; all precision-sensitive math stays on VPU/EUP.
    rtol, atol = 5e-3, 2e-4

    # 'mean' reduction
    out_mean = jax.block_until_ready(loss_mod(pred, soft))
    assert out_mean.shape == ()
    assert jnp.allclose(out_mean, jnp.mean(ref_rows), rtol=rtol, atol=atol), (
        out_mean, jnp.mean(ref_rows))

    # 'none' reduction with per-sample weights
    w = (jax.random.uniform(k3, (N,)) > 0.5).astype(jnp.float32)
    out_none = jax.block_until_ready(
        loss_mod(pred, soft, weight=w, reduction_override='none'))
    assert out_none.shape == (N,)
    assert jnp.allclose(out_none, ref_rows * w, rtol=rtol, atol=atol)

    # 'mean' with avg_factor
    out_avg = jax.block_until_ready(
        loss_mod(pred, soft, avg_factor=25.0, reduction_override='mean'))
    assert jnp.allclose(out_avg, jnp.sum(ref_rows) / 25.0, rtol=rtol, atol=atol)

    # bf16 logits accepted (cast to f32 inside the kernel).
    out_bf16 = jax.block_until_ready(
        loss_mod(pred.astype(jnp.bfloat16), soft.astype(jnp.bfloat16)))
    assert jnp.isfinite(out_bf16)

    print("KERNEL_OK")
</pallas_src>

<mosaic_0001>
module attributes {stable_mosaic.version = 11 : i64} {
  func.func @_kd_kl_div_kernel(%arg0: i32, %arg1: memref<128x128xf32, #tpu.memory_space<vmem>>, %arg2: memref<128x128xf32, #tpu.memory_space<vmem>>, %arg3: memref<1x8x128xf32, #tpu.memory_space<vmem>>) attributes {dimension_semantics = [#tpu.dimension_semantics<parallel>], iteration_bounds = array<i64: 1>, scalar_prefetch = 0 : i64, scratch_operands = 0 : i64, tpu.core_type = #tpu.core_type<tc>, window_params = [{transform_indices = @transform_0, window_bounds = array<i64: 128, 128>}, {transform_indices = @transform_1, window_bounds = array<i64: 128, 128>}, {transform_indices = @transform_2, window_bounds = array<i64: 1, 8, 128>}]} {
    %c0 = arith.constant 0 : index
    %c0_0 = arith.constant 0 : index
    %0 = vector.load %arg1[%c0, %c0_0] : memref<128x128xf32, #tpu.memory_space<vmem>>, vector<128x128xf32>
    %cst = arith.constant 1.000000e-01 : f32
    %1 = vector.broadcast %cst : f32 to vector<128x128xf32>
    %2 = arith.mulf %0, %1 : vector<128x128xf32>
    %c0_1 = arith.constant 0 : index
    %c0_2 = arith.constant 0 : index
    %3 = vector.load %arg2[%c0_1, %c0_2] : memref<128x128xf32, #tpu.memory_space<vmem>>, vector<128x128xf32>
    %cst_3 = arith.constant 1.000000e-01 : f32
    %4 = vector.broadcast %cst_3 : f32 to vector<128x128xf32>
    %5 = arith.mulf %3, %4 : vector<128x128xf32>
    %cst_4 = arith.constant dense<0xFF800000> : vector<128xf32>
    %6 = vector.multi_reduction <maximumf>, %2, %cst_4 [1] : vector<128x128xf32> to vector<128xf32>
    %7 = vector.shape_cast %6 : vector<128xf32> to vector<128x1xf32>
    %8 = vector.broadcast %7 : vector<128x1xf32> to vector<128x128xf32>
    %9 = arith.subf %2, %8 : vector<128x128xf32>
    %cst_5 = arith.constant dense<0xFF800000> : vector<128xf32>
    %10 = vector.multi_reduction <maximumf>, %5, %cst_5 [1] : vector<128x128xf32> to vector<128xf32>
    %11 = vector.shape_cast %10 : vector<128xf32> to vector<128x1xf32>
    %12 = vector.broadcast %11 : vector<128x1xf32> to vector<128x128xf32>
    %13 = arith.subf %5, %12 : vector<128x128xf32>
    %14 = math.exp %9 : vector<128x128xf32>
    %15 = math.exp %13 : vector<128x128xf32>
    %cst_6 = arith.constant dense<0.000000e+00> : vector<128xf32>
    %16 = vector.multi_reduction <add>, %14, %cst_6 [1] : vector<128x128xf32> to vector<128xf32>
    %17 = vector.shape_cast %16 : vector<128xf32> to vector<128x1xf32>
    %cst_7 = arith.constant dense<0.000000e+00> : vector<128xf32>
    %18 = vector.multi_reduction <add>, %15, %cst_7 [1] : vector<128x128xf32> to vector<128xf32>
    %19 = vector.shape_cast %18 : vector<128xf32> to vector<128x1xf32>
    %20 = tpu.reciprocal %19 : vector<128x1xf32> -> vector<128x1xf32>
    %21 = vector.broadcast %20 : vector<128x1xf32> to vector<128x128xf32>
    %22 = arith.mulf %15, %21 : vector<128x128xf32>
    %23 = arith.subf %13, %9 : vector<128x128xf32>
    %24 = math.log %17 : vector<128x1xf32>
    %25 = math.log %19 : vector<128x1xf32>
    %26 = arith.subf %24, %25 : vector<128x1xf32>
    %27 = vector.broadcast %26 : vector<128x1xf32> to vector<128x128xf32>
    %28 = arith.addf %23, %27 : vector<128x128xf32>
    %29 = arith.mulf %22, %28 : vector<128x128xf32>
    %30 = tpu.iota {dimensions = array<i32: 1>} : vector<8x128xi32>
    %c81_i32 = arith.constant 81 : i32
    %31 = vector.broadcast %c81_i32 : i32 to vector<8x128xi32>
    %32 = arith.cmpi slt, %30, %31 : vector<8x128xi32>
    %33 = arith.extui %32 : vector<8x128xi1> to vector<8x128xi32>
    %34 = arith.sitofp %33 : vector<8x128xi32> to vector<8x128xf32>
    %cst_8 = arith.constant dense<0.000000e+00> : vector<8x128xf32>
    %35 = tpu.matmul %34, %29, %cst_8 {dimension_numbers = #tpu.dot_dimension_numbers<[1], [1], [0], [0], [0, 0, 1, 0], [], []>} : vector<8x128xf32>, vector<128x128xf32>, vector<8x128xf32> -> vector<8x128xf32>
    %cst_9 = arith.constant 1.23456788 : f32
    %36 = vector.broadcast %cst_9 : f32 to vector<8x128xf32>
    %37 = arith.mulf %35, %36 : vector<8x128xf32>
    %c0_10 = arith.constant 0 : index
    %c0_11 = arith.constant 0 : index
    %c0_12 = arith.constant 0 : index
    %38 = vector.load %arg3[%c0_10, %c0_11, %c0_12] : memref<1x8x128xf32, #tpu.memory_space<vmem>>, vector<1x8x128xf32>
    %39 = vector.shape_cast %38 : vector<1x8x128xf32> to vector<8x128xf32>
    %40 = vector.shape_cast %37 : vector<8x128xf32> to vector<1x8x128xf32>
    tpu.vector_store %arg3[%c0_10, %c0_11, %c0_12], %40 {strides = array<i32>} : memref<1x8x128xf32, #tpu.memory_space<vmem>>, vector<1x8x128xf32>,
    return
  }
  func.func @transform_0(%arg0: i32) -> (i32, i32) {
    %c0_i32 = arith.constant 0 : i32
    %c0_i32_0 = arith.constant 0 : i32
    return %arg0, %c0_i32 : i32, i32
  }
  func.func @transform_1(%arg0: i32) -> (i32, i32) {
    %c0_i32 = arith.constant 0 : i32
    %c0_i32_0 = arith.constant 0 : i32
    return %arg0, %c0_i32 : i32, i32
  }
  func.func @transform_2(%arg0: i32) -> (i32, i32, i32) {
    %c0_i32 = arith.constant 0 : i32
    %c0_i32_0 = arith.constant 0 : i32
    %c0_i32_1 = arith.constant 0 : i32
    return %arg0, %c0_i32, %c0_i32_0 : i32, i32, i32
  }
}

</mosaic_0001>

<llo_original>
// kernel: tpu_custom_call.1
$region0: #{tpu_custom_call.1}
  #allocation0 [shape = 'u32[]', space=smem, size = 0x4, offset = 0x4, fixed_abs, tag = 'smem constant byte address 0x4 - core index']
  #allocation1 [shape = 'u32[144,128]{1,0:T(1,128)}', space=vmem, size = 0x12000, scoped, tag = 'internal scratch']
  %s0 = inlined_call_operand.hbm [shape: f32[128,128], index: 0, kind: input, shape index: {}]
  %s1 = inlined_call_operand.hbm [shape: f32[128,128], index: 1, kind: input, shape index: {}]
  %s2 = inlined_call_operand.hbm [shape: f32[1,8,128], index: 2, kind: output, shape index: {}]
  %s3 = sld [smem:[#allocation0]]
  $region26: #{tpu_custom_call.1} parent=0
    _
  %s5 = ssub.s32 1, %s3
  %s6 = scalar_select 0, %s5, %s3
  $region1: #{tpu_custom_call.1} parent=0
    #allocation2 [shape = 'u8[65536]{0}', space=vmem, size = 0x10000, scoped, tag = 'input window, operand 0, single buffered']
    #allocation3 [shape = 's32[1]{0}', space=sflag, size = 0x4, scoped, tag = 'scoped memory for tpu_custom_call.1']
    #allocation4 [shape = 's32[1]{0}', space=sflag, size = 0x4, scoped, tag = 'scoped memory for tpu_custom_call.1']
    #allocation5 [shape = 'u8[65536]{0}', space=vmem, size = 0x10000, scoped, tag = 'input window, operand 1, single buffered']
    #allocation6 [shape = 's32[1]{0}', space=sflag, size = 0x4, scoped, tag = 'scoped memory for tpu_custom_call.1']
    #allocation7 [shape = 'u8[4096]{0}', space=vmem, size = 0x1000, scoped, tag = 'output window, operand 0, single buffered']
    %7 = vsyncpa [#allocation3], 0
    %8 = vsyncpa [#allocation6], 0
    %9 = vsyncpa [#allocation4], 0
    // Predicated region
    $region2: #{tpu_custom_call.1} parent=1 // pred_check
      _
    $region3: #{tpu_custom_call.1} parent=1 // pred_check_branch
      %11 = sbr.rel (0) target = $region5
    $region4: #{tpu_custom_call.1} parent=1 // pred_region
      %s13 = ssub.s32 2048, 2048
      %14 = vsyncadd [#allocation3], %s13
      %s15 = sshll.u32 [#allocation2], 4
      %s16 = int_to_ptr.vmem [resolvable:$true] %s15
      %21 = dma.hbm_to_vmem [thread:$0]  %s0, 2048, %s16, [#allocation3], 128, 128, 8
    $region5: #{tpu_custom_call.1} parent=1 // pred_fallthru
      _
    // Predicated region
    $region6: #{tpu_custom_call.1} parent=1 // pred_check
      _
    $region7: #{tpu_custom_call.1} parent=1 // pred_check_branch
      %23 = sbr.rel (0) target = $region9
    $region8: #{tpu_custom_call.1} parent=1 // pred_region
      %s25 = ssub.s32 2048, 2048
      %26 = vsyncadd [#allocation6], %s25
      %s27 = sshll.u32 [#allocation5], 4
      %s28 = int_to_ptr.vmem [resolvable:$true] %s27
      %33 = dma.hbm_to_vmem [thread:$0]  %s1, 2048, %s28, [#allocation6], 128, 128, 8
    $region9: #{tpu_custom_call.1} parent=1 // pred_fallthru
      _
    // Predicated region
    $region10: #{tpu_custom_call.1} parent=1 // pred_check
      _
    $region11: #{tpu_custom_call.1} parent=1 // pred_check_branch
      %35 = sbr.rel (0) target = $region13
    $region12: #{tpu_custom_call.1} parent=1 // pred_region
      %36 = dma.done [#allocation3], 2048
    $region13: #{tpu_custom_call.1} parent=1 // pred_fallthru
      _
    // Predicated region
    $region14: #{tpu_custom_call.1} parent=1 // pred_check
      _
    $region15: #{tpu_custom_call.1} parent=1 // pred_check_branch
      %38 = sbr.rel (0) target = $region17
    $region16: #{tpu_custom_call.1} parent=1 // pred_region
      %39 = dma.done [#allocation6], 2048
    $region17: #{tpu_custom_call.1} parent=1 // pred_fallthru
      _
    %v40 = vld [vmem:[#allocation2] sm:$0xff]
    %v41 = vld [vmem:[#allocation2 + $0x8] sm:$0xff]
    %v42 = vld [vmem:[#allocation2 + $0x10] sm:$0xff]
    %v43 = vld [vmem:[#allocation2 + $0x18] sm:$0xff]
    %v44 = vld [vmem:[#allocation2 + $0x20] sm:$0xff]
    %v45 = vld [vmem:[#allocation2 + $0x28] sm:$0xff]
    %v46 = vld [vmem:[#allocation2 + $0x30] sm:$0xff]
    %v47 = vld [vmem:[#allocation2 + $0x38] sm:$0xff]
    %v48 = vld [vmem:[#allocation2 + $0x40] sm:$0xff]
    %v49 = vld [vmem:[#allocation2 + $0x48] sm:$0xff]
    %v50 = vld [vmem:[#allocation2 + $0x50] sm:$0xff]
    %v51 = vld [vmem:[#allocation2 + $0x58] sm:$0xff]
    %v52 = vld [vmem:[#allocation2 + $0x60] sm:$0xff]
    %v53 = vld [vmem:[#allocation2 + $0x68] sm:$0xff]
    %v54 = vld [vmem:[#allocation2 + $0x70] sm:$0xff]
    %v55 = vld [vmem:[#allocation2 + $0x78] sm:$0xff]
    %v56 = vmul.f32 %v40, 0.1
    %v57 = vmul.f32 %v41, 0.1
    %v58 = vmul.f32 %v42, 0.1
    %v59 = vmul.f32 %v43, 0.1
    %v60 = vmul.f32 %v44, 0.1
    %v61 = vmul.f32 %v45, 0.1
    %v62 = vmul.f32 %v46, 0.1
    %v63 = vmul.f32 %v47, 0.1
    %v64 = vmul.f32 %v48, 0.1
    %v65 = vmul.f32 %v49, 0.1
    %v66 = vmul.f32 %v50, 0.1
    %v67 = vmul.f32 %v51, 0.1
    %v68 = vmul.f32 %v52, 0.1
    %v69 = vmul.f32 %v53, 0.1
    %v70 = vmul.f32 %v54, 0.1
    %v71 = vmul.f32 %v55, 0.1
    %v72 = vld [vmem:[#allocation5] sm:$0xff]
    %v73 = vld [vmem:[#allocation5 + $0x8] sm:$0xff]
    %v74 = vld [vmem:[#allocation5 + $0x10] sm:$0xff]
    %v75 = vld [vmem:[#allocation5 + $0x18] sm:$0xff]
    %v76 = vld [vmem:[#allocation5 + $0x20] sm:$0xff]
    %v77 = vld [vmem:[#allocation5 + $0x28] sm:$0xff]
    %v78 = vld [vmem:[#allocation5 + $0x30] sm:$0xff]
    %v79 = vld [vmem:[#allocation5 + $0x38] sm:$0xff]
    %v80 = vld [vmem:[#allocation5 + $0x40] sm:$0xff]
    %v81 = vld [vmem:[#allocation5 + $0x48] sm:$0xff]
    %v82 = vld [vmem:[#allocation5 + $0x50] sm:$0xff]
    %v83 = vld [vmem:[#allocation5 + $0x58] sm:$0xff]
    %v84 = vld [vmem:[#allocation5 + $0x60] sm:$0xff]
    %v85 = vld [vmem:[#allocation5 + $0x68] sm:$0xff]
    %v86 = vld [vmem:[#allocation5 + $0x70] sm:$0xff]
    %v87 = vld [vmem:[#allocation5 + $0x78] sm:$0xff]
    %v88 = vmul.f32 %v72, 0.1
    %v89 = vmul.f32 %v73, 0.1
    %v90 = vmul.f32 %v74, 0.1
    %v91 = vmul.f32 %v75, 0.1
    %v92 = vmul.f32 %v76, 0.1
    %v93 = vmul.f32 %v77, 0.1
    %v94 = vmul.f32 %v78, 0.1
    %v95 = vmul.f32 %v79, 0.1
    %v96 = vmul.f32 %v80, 0.1
    %v97 = vmul.f32 %v81, 0.1
    %v98 = vmul.f32 %v82, 0.1
    %v99 = vmul.f32 %v83, 0.1
    %v100 = vmul.f32 %v84, 0.1
    %v101 = vmul.f32 %v85, 0.1
    %v102 = vmul.f32 %v86, 0.1
    %v103 = vmul.f32 %v87, 0.1
    %104 = vmax.xlane.f32.xlu0 %v56
    %v105 = vpop.xlane.xlu0 %104
    %106 = vmax.xlane.f32.xlu0 %v57
    %v107 = vpop.xlane.xlu0 %106
    %108 = vmax.xlane.f32.xlu0 %v58
    %v109 = vpop.xlane.xlu0 %108
    %110 = vmax.xlane.f32.xlu0 %v59
    %v111 = vpop.xlane.xlu0 %110
    %112 = vmax.xlane.f32.xlu0 %v60
    %v113 = vpop.xlane.xlu0 %112
    %114 = vmax.xlane.f32.xlu0 %v61
    %v115 = vpop.xlane.xlu0 %114
    %116 = vmax.xlane.f32.xlu0 %v62
    %v117 = vpop.xlane.xlu0 %116
    %118 = vmax.xlane.f32.xlu0 %v63
    %v119 = vpop.xlane.xlu0 %118
    %120 = vmax.xlane.f32.xlu0 %v64
    %v121 = vpop.xlane.xlu0 %120
    %122 = vmax.xlane.f32.xlu0 %v65
    %v123 = vpop.xlane.xlu0 %122
    %124 = vmax.xlane.f32.xlu0 %v66
    %v125 = vpop.xlane.xlu0 %124
    %126 = vmax.xlane.f32.xlu0 %v67
    %v127 = vpop.xlane.xlu0 %126
    %128 = vmax.xlane.f32.xlu0 %v68
    %v129 = vpop.xlane.xlu0 %128
    %130 = vmax.xlane.f32.xlu0 %v69
    %v131 = vpop.xlane.xlu0 %130
    %132 = vmax.xlane.f32.xlu0 %v70
    %v133 = vpop.xlane.xlu0 %132
    %134 = vmax.xlane.f32.xlu0 %v71
    %v135 = vpop.xlane.xlu0 %134
    %v136 = vsub.f32 %v56, %v105
    %v137 = vsub.f32 %v57, %v107
    %v138 = vsub.f32 %v58, %v109
    %v139 = vsub.f32 %v59, %v111
    %v140 = vsub.f32 %v60, %v113
    %v141 = vsub.f32 %v61, %v115
    %v142 = vsub.f32 %v62, %v117
    %v143 = vsub.f32 %v63, %v119
    %v144 = vsub.f32 %v64, %v121
    %v145 = vsub.f32 %v65, %v123
    %v146 = vsub.f32 %v66, %v125
    %v147 = vsub.f32 %v67, %v127
    %v148 = vsub.f32 %v68, %v129
    %v149 = vsub.f32 %v69, %v131
    %v150 = vsub.f32 %v70, %v133
    %v151 = vsub.f32 %v71, %v135
    %152 = vmax.xlane.f32.xlu0 %v88
    %v153 = vpop.xlane.xlu0 %152
    %154 = vmax.xlane.f32.xlu0 %v89
    %v155 = vpop.xlane.xlu0 %154
    %156 = vmax.xlane.f32.xlu0 %v90
    %v157 = vpop.xlane.xlu0 %156
    %158 = vmax.xlane.f32.xlu0 %v91
    %v159 = vpop.xlane.xlu0 %158
    %160 = vmax.xlane.f32.xlu0 %v92
    %v161 = vpop.xlane.xlu0 %160
    %162 = vmax.xlane.f32.xlu0 %v93
    %v163 = vpop.xlane.xlu0 %162
    %164 = vmax.xlane.f32.xlu0 %v94
    %v165 = vpop.xlane.xlu0 %164
    %166 = vmax.xlane.f32.xlu0 %v95
    %v167 = vpop.xlane.xlu0 %166
    %168 = vmax.xlane.f32.xlu0 %v96
    %v169 = vpop.xlane.xlu0 %168
    %170 = vmax.xlane.f32.xlu0 %v97
    %v171 = vpop.xlane.xlu0 %170
    %172 = vmax.xlane.f32.xlu0 %v98
    %v173 = vpop.xlane.xlu0 %172
    %174 = vmax.xlane.f32.xlu0 %v99
    %v175 = vpop.xlane.xlu0 %174
    %176 = vmax.xlane.f32.xlu0 %v100
    %v177 = vpop.xlane.xlu0 %176
    %178 = vmax.xlane.f32.xlu0 %v101
    %v179 = vpop.xlane.xlu0 %178
    %180 = vmax.xlane.f32.xlu0 %v102
    %v181 = vpop.xlane.xlu0 %180
    %182 = vmax.xlane.f32.xlu0 %v103
    %v183 = vpop.xlane.xlu0 %182
    %v184 = vsub.f32 %v88, %v153
    %v185 = vsub.f32 %v89, %v155
    %v186 = vsub.f32 %v90, %v157
    %v187 = vsub.f32 %v91, %v159
    %v188 = vsub.f32 %v92, %v161
    %v189 = vsub.f32 %v93, %v163
    %v190 = vsub.f32 %v94, %v165
    %v191 = vsub.f32 %v95, %v167
    %v192 = vsub.f32 %v96, %v169
    %v193 = vsub.f32 %v97, %v171
    %v194 = vsub.f32 %v98, %v173
    %v195 = vsub.f32 %v99, %v175
    %v196 = vsub.f32 %v100, %v177
    %v197 = vsub.f32 %v101, %v179
    %v198 = vsub.f32 %v102, %v181
    %v199 = vsub.f32 %v103, %v183
    %v200 = vmul.f32 %v136, 1.442695
    %v201 = vpow.pop %v200
    %v202 = vmul.f32 %v137, 1.442695
    %v203 = vpow.pop %v202
    %v204 = vmul.f32 %v138, 1.442695
    %v205 = vpow.pop %v204
    %v206 = vmul.f32 %v139, 1.442695
    %v207 = vpow.pop %v206
    %v208 = vmul.f32 %v140, 1.442695
    %v209 = vpow.pop %v208
    %v210 = vmul.f32 %v141, 1.442695
    %v211 = vpow.pop %v210
    %v212 = vmul.f32 %v142, 1.442695
    %v213 = vpow.pop %v212
    %v214 = vmul.f32 %v143, 1.442695
    %v215 = vpow.pop %v214
    %v216 = vmul.f32 %v144, 1.442695
    %v217 = vpow.pop %v216
    %v218 = vmul.f32 %v145, 1.442695
    %v219 = vpow.pop %v218
    %v220 = vmul.f32 %v146, 1.442695
    %v221 = vpow.pop %v220
    %v222 = vmul.f32 %v147, 1.442695
    %v223 = vpow.pop %v222
    %v224 = vmul.f32 %v148, 1.442695
    %v225 = vpow.pop %v224
    %v226 = vmul.f32 %v149, 1.442695
    %v227 = vpow.pop %v226
    %v228 = vmul.f32 %v150, 1.442695
    %v229 = vpow.pop %v228
    %v230 = vmul.f32 %v151, 1.442695
    %v231 = vpow.pop %v230
    %v232 = vmul.f32 %v184, 1.442695
    %v233 = vpow.pop %v232
    %v234 = vmul.f32 %v185, 1.442695
    %v235 = vpow.pop %v234
    %v236 = vmul.f32 %v186, 1.442695
    %v237 = vpow.pop %v236
    %v238 = vmul.f32 %v187, 1.442695
    %v239 = vpow.pop %v238
    %v240 = vmul.f32 %v188, 1.442695
    %v241 = vpow.pop %v240
    %v242 = vmul.f32 %v189, 1.442695
    %v243 = vpow.pop %v242
    %v244 = vmul.f32 %v190, 1.442695
    %v245 = vpow.pop %v244
    %v246 = vmul.f32 %v191, 1.442695
    %v247 = vpow.pop %v246
    %v248 = vmul.f32 %v192, 1.442695
    %v249 = vpow.pop %v248
    %v250 = vmul.f32 %v193, 1.442695
    %v251 = vpow.pop %v250
    %v252 = vmul.f32 %v194, 1.442695
    %v253 = vpow.pop %v252
    %v254 = vmul.f32 %v195, 1.442695
    %v255 = vpow.pop %v254
    %v256 = vmul.f32 %v196, 1.442695
    %v257 = vpow.pop %v256
    %v258 = vmul.f32 %v197, 1.442695
    %v259 = vpow.pop %v258
    %v260 = vmul.f32 %v198, 1.442695
    %v261 = vpow.pop %v260
    %v262 = vmul.f32 %v199, 1.442695
    %v263 = vpow.pop %v262
    %264 = vadd.xlane.f32.xlu0 %v201
    %v265 = vpop.xlane.xlu0 %264
    %266 = vadd.xlane.f32.xlu0 %v203
    %v267 = vpop.xlane.xlu0 %266
    %268 = vadd.xlane.f32.xlu0 %v205
    %v269 = vpop.xlane.xlu0 %268
    %270 = vadd.xlane.f32.xlu0 %v207
    %v271 = vpop.xlane.xlu0 %270
    %272 = vadd.xlane.f32.xlu0 %v209
    %v273 = vpop.xlane.xlu0 %272
    %274 = vadd.xlane.f32.xlu0 %v211
    %v275 = vpop.xlane.xlu0 %274
    %276 = vadd.xlane.f32.xlu0 %v213
    %v277 = vpop.xlane.xlu0 %276
    %278 = vadd.xlane.f32.xlu0 %v215
    %v279 = vpop.xlane.xlu0 %278
    %280 = vadd.xlane.f32.xlu0 %v217
    %v281 = vpop.xlane.xlu0 %280
    %282 = vadd.xlane.f32.xlu0 %v219
    %v283 = vpop.xlane.xlu0 %282
    %284 = vadd.xlane.f32.xlu0 %v221
    %v285 = vpop.xlane.xlu0 %284
    %286 = vadd.xlane.f32.xlu0 %v223
    %v287 = vpop.xlane.xlu0 %286
    %288 = vadd.xlane.f32.xlu0 %v225
    %v289 = vpop.xlane.xlu0 %288
    %290 = vadd.xlane.f32.xlu0 %v227
    %v291 = vpop.xlane.xlu0 %290
    %292 = vadd.xlane.f32.xlu0 %v229
    %v293 = vpop.xlane.xlu0 %292
    %294 = vadd.xlane.f32.xlu0 %v231
    %v295 = vpop.xlane.xlu0 %294
    %296 = vadd.xlane.f32.xlu0 %v233
    %v297 = vpop.xlane.xlu0 %296
    %298 = vadd.xlane.f32.xlu0 %v235
    %v299 = vpop.xlane.xlu0 %298
    %300 = vadd.xlane.f32.xlu0 %v237
    %v301 = vpop.xlane.xlu0 %300
    %302 = vadd.xlane.f32.xlu0 %v239
    %v303 = vpop.xlane.xlu0 %302
    %304 = vadd.xlane.f32.xlu0 %v241
    %v305 = vpop.xlane.xlu0 %304
    %306 = vadd.xlane.f32.xlu0 %v243
    %v307 = vpop.xlane.xlu0 %306
    %308 = vadd.xlane.f32.xlu0 %v245
    %v309 = vpop.xlane.xlu0 %308
    %310 = vadd.xlane.f32.xlu0 %v247
    %v311 = vpop.xlane.xlu0 %310
    %312 = vadd.xlane.f32.xlu0 %v249
    %v313 = vpop.xlane.xlu0 %312
    %314 = vadd.xlane.f32.xlu0 %v251
    %v315 = vpop.xlane.xlu0 %314
    %316 = vadd.xlane.f32.xlu0 %v253
    %v317 = vpop.xlane.xlu0 %316
    %318 = vadd.xlane.f32.xlu0 %v255
    %v319 = vpop.xlane.xlu0 %318
    %320 = vadd.xlane.f32.xlu0 %v257
    %v321 = vpop.xlane.xlu0 %320
    %322 = vadd.xlane.f32.xlu0 %v259
    %v323 = vpop.xlane.xlu0 %322
    %324 = vadd.xlane.f32.xlu0 %v261
    %v325 = vpop.xlane.xlu0 %324
    %326 = vadd.xlane.f32.xlu0 %v263
    %v327 = vpop.xlane.xlu0 %326
    %v328 = vrcp.pop %v297
    %v329 = vrcp.pop %v299
    %v330 = vrcp.pop %v301
    %v331 = vrcp.pop %v303
    %v332 = vrcp.pop %v305
    %v333 = vrcp.pop %v307
    %v334 = vrcp.pop %v309
    %v335 = vrcp.pop %v311
    %v336 = vrcp.pop %v313
    %v337 = vrcp.pop %v315
    %v338 = vrcp.pop %v317
    %v339 = vrcp.pop %v319
    %v340 = vrcp.pop %v321
    %v341 = vrcp.pop %v323
    %v342 = vrcp.pop %v325
    %v343 = vrcp.pop %v327
    %v344 = vmul.f32 %v233, %v328
    %v345 = vmul.f32 %v235, %v329
    %v346 = vmul.f32 %v237, %v330
    %v347 = vmul.f32 %v239, %v331
    %v348 = vmul.f32 %v241, %v332
    %v349 = vmul.f32 %v243, %v333
    %v350 = vmul.f32 %v245, %v334
    %v351 = vmul.f32 %v247, %v335
    %v352 = vmul.f32 %v249, %v336
    %v353 = vmul.f32 %v251, %v337
    %v354 = vmul.f32 %v253, %v338
    %v355 = vmul.f32 %v255, %v339
    %v356 = vmul.f32 %v257, %v340
    %v357 = vmul.f32 %v259, %v341
    %v358 = vmul.f32 %v261, %v342
    %v359 = vmul.f32 %v263, %v343
    %v360 = vsub.f32 %v184, %v136
    %v361 = vsub.f32 %v185, %v137
    %v362 = vsub.f32 %v186, %v138
    %v363 = vsub.f32 %v187, %v139
    %v364 = vsub.f32 %v188, %v140
    %v365 = vsub.f32 %v189, %v141
    %v366 = vsub.f32 %v190, %v142
    %v367 = vsub.f32 %v191, %v143
    %v368 = vsub.f32 %v192, %v144
    %v369 = vsub.f32 %v193, %v145
    %v370 = vsub.f32 %v194, %v146
    %v371 = vsub.f32 %v195, %v147
    %v372 = vsub.f32 %v196, %v148
    %v373 = vsub.f32 %v197, %v149
    %v374 = vsub.f32 %v198, %v150
    %v375 = vsub.f32 %v199, %v151
    %v376 = vlog2.pop %v265
    %v377 = vmul.f32 %v376, 0.6931472
    %v378 = vlog2.pop %v267
    %v379 = vmul.f32 %v378, 0.6931472
    %v380 = vlog2.pop %v269
    %v381 = vmul.f32 %v380, 0.6931472
    %v382 = vlog2.pop %v271
    %v383 = vmul.f32 %v382, 0.6931472
    %v384 = vlog2.pop %v273
    %v385 = vmul.f32 %v384, 0.6931472
    %v386 = vlog2.pop %v275
    %v387 = vmul.f32 %v386, 0.6931472
    %v388 = vlog2.pop %v277
    %v389 = vmul.f32 %v388, 0.6931472
    %v390 = vlog2.pop %v279
    %v391 = vmul.f32 %v390, 0.6931472
    %v392 = vlog2.pop %v281
    %v393 = vmul.f32 %v392, 0.6931472
    %v394 = vlog2.pop %v283
    %v395 = vmul.f32 %v394, 0.6931472
    %v396 = vlog2.pop %v285
    %v397 = vmul.f32 %v396, 0.6931472
    %v398 = vlog2.pop %v287
    %v399 = vmul.f32 %v398, 0.6931472
    %v400 = vlog2.pop %v289
    %v401 = vmul.f32 %v400, 0.6931472
    %v402 = vlog2.pop %v291
    %v403 = vmul.f32 %v402, 0.6931472
    %v404 = vlog2.pop %v293
    %v405 = vmul.f32 %v404, 0.6931472
    %v406 = vlog2.pop %v295
    %v407 = vmul.f32 %v406, 0.6931472
    %v408 = vlog2.pop %v297
    %v409 = vmul.f32 %v408, 0.6931472
    %v410 = vlog2.pop %v299
    %v411 = vmul.f32 %v410, 0.6931472
    %v412 = vlog2.pop %v301
    %v413 = vmul.f32 %v412, 0.6931472
    %v414 = vlog2.pop %v303
    %v415 = vmul.f32 %v414, 0.6931472
    %v416 = vlog2.pop %v305
    %v417 = vmul.f32 %v416, 0.6931472
    %v418 = vlog2.pop %v307
    %v419 = vmul.f32 %v418, 0.6931472
    %v420 = vlog2.pop %v309
    %v421 = vmul.f32 %v420, 0.6931472
    %v422 = vlog2.pop %v311
    %v423 = vmul.f32 %v422, 0.6931472
    %v424 = vlog2.pop %v313
    %v425 = vmul.f32 %v424, 0.6931472
    %v426 = vlog2.pop %v315
    %v427 = vmul.f32 %v426, 0.6931472
    %v428 = vlog2.pop %v317
    %v429 = vmul.f32 %v428, 0.6931472
    %v430 = vlog2.pop %v319
    %v431 = vmul.f32 %v430, 0.6931472
    %v432 = vlog2.pop %v321
    %v433 = vmul.f32 %v432, 0.6931472
    %v434 = vlog2.pop %v323
    %v435 = vmul.f32 %v434, 0.6931472
    %v436 = vlog2.pop %v325
    %v437 = vmul.f32 %v436, 0.6931472
    %v438 = vlog2.pop %v327
    %v439 = vmul.f32 %v438, 0.6931472
    %v440 = vsub.f32 %v377, %v409
    %v441 = vsub.f32 %v379, %v411
    %v442 = vsub.f32 %v381, %v413
    %v443 = vsub.f32 %v383, %v415
    %v444 = vsub.f32 %v385, %v417
    %v445 = vsub.f32 %v387, %v419
    %v446 = vsub.f32 %v389, %v421
    %v447 = vsub.f32 %v391, %v423
    %v448 = vsub.f32 %v393, %v425
    %v449 = vsub.f32 %v395, %v427
    %v450 = vsub.f32 %v397, %v429
    %v451 = vsub.f32 %v399, %v431
    %v452 = vsub.f32 %v401, %v433
    %v453 = vsub.f32 %v403, %v435
    %v454 = vsub.f32 %v405, %v437
    %v455 = vsub.f32 %v407, %v439
    %v456 = vadd.f32 %v360, %v440
    %v457 = vadd.f32 %v361, %v441
    %v458 = vadd.f32 %v362, %v442
    %v459 = vadd.f32 %v363, %v443
    %v460 = vadd.f32 %v364, %v444
    %v461 = vadd.f32 %v365, %v445
    %v462 = vadd.f32 %v366, %v446
    %v463 = vadd.f32 %v367, %v447
    %v464 = vadd.f32 %v368, %v448
    %v465 = vadd.f32 %v369, %v449
    %v466 = vadd.f32 %v370, %v450
    %v467 = vadd.f32 %v371, %v451
    %v468 = vadd.f32 %v372, %v452
    %v469 = vadd.f32 %v373, %v453
    %v470 = vadd.f32 %v374, %v454
    %v471 = vadd.f32 %v375, %v455
    %v472 = vmul.f32 %v344, %v456
    %v473 = vmul.f32 %v345, %v457
    %v474 = vmul.f32 %v346, %v458
    %v475 = vmul.f32 %v347, %v459
    %v476 = vmul.f32 %v348, %v460
    %v477 = vmul.f32 %v349, %v461
    %v478 = vmul.f32 %v350, %v462
    %v479 = vmul.f32 %v351, %v463
    %v480 = vmul.f32 %v352, %v464
    %v481 = vmul.f32 %v353, %v465
    %v482 = vmul.f32 %v354, %v466
    %v483 = vmul.f32 %v355, %v467
    %v484 = vmul.f32 %v356, %v468
    %v485 = vmul.f32 %v357, %v469
    %v486 = vmul.f32 %v358, %v470
    %v487 = vmul.f32 %v359, %v471
    %v488 = vlaneseq
    %v489 = vand.u32 %v488, 127
    %vm490 = vcmp.lt.s32.totalorder %v489, 81
    %v491 = vsel %vm490, 1, 0
    %v492 = vcvt.s32.f32 %v491
    %493 = vmatprep.subr.mxu0 0.0
    %494 = vmatpush1.xpose.msra.mxu0 %v472
    %495 = vmatprep.subr.mxu0 0.0
    %496 = vmatpush1.xpose.msra.mxu0 %v473
    %497 = vmatprep.subr.mxu0 0.0
    %498 = vmatpush1.xpose.msra.mxu0 %v474
    %499 = vmatprep.subr.mxu0 0.0
    %500 = vmatpush1.xpose.msra.mxu0 %v475
    %501 = vmatprep.subr.mxu0 0.0
    %502 = vmatpush1.xpose.msra.mxu0 %v476
    %503 = vmatprep.subr.mxu0 0.0
    %504 = vmatpush1.xpose.msra.mxu0 %v477
    %505 = vmatprep.subr.mxu0 0.0
    %506 = vmatpush1.xpose.msra.mxu0 %v478
    %507 = vmatprep.subr.mxu0 0.0
    %508 = vmatpush1.xpose.msra.mxu0 %v479
    %509 = vmatprep.subr.mxu0 0.0
    %510 = vmatpush1.xpose.msra.mxu0 %v480
    %511 = vmatprep.subr.mxu0 0.0
    %512 = vmatpush1.xpose.msra.mxu0 %v481
    %513 = vmatprep.subr.mxu0 0.0
    %514 = vmatpush1.xpose.msra.mxu0 %v482
    %515 = vmatprep.subr.mxu0 0.0
    %516 = vmatpush1.xpose.msra.mxu0 %v483
    %517 = vmatprep.subr.mxu0 0.0
    %518 = vmatpush1.xpose.msra.mxu0 %v484
    %519 = vmatprep.subr.mxu0 0.0
    %520 = vmatpush1.xpose.msra.mxu0 %v485
    %521 = vmatprep.subr.mxu0 0.0
    %522 = vmatpush1.xpose.msra.mxu0 %v486
    %523 = vmatprep.subr.mxu0 0.0
    %524 = vmatpush1.xpose.msra.mxu0 %v487
    %525 = vmatprep.subr.mxu0 0.0
    %526 = vmatpush1.xpose.msra.mxu0 0.0
    %527 = vmatprep.subr.mxu0 0.0
    %528 = vmatpush1.xpose.msra.mxu0 0.0
    %529 = vmatprep.subr.mxu0 0.0
    %530 = vmatpush1.xpose.msra.mxu0 0.0
    %531 = vmatprep.subr.mxu0 0.0
    %532 = vmatpush1.xpose.msra.mxu0 0.0
    %533 = vmatprep.subr.mxu0 0.0
    %534 = vmatpush1.xpose.msra.mxu0 0.0
    %535 = vmatprep.subr.mxu0 0.0
    %536 = vmatpush1.xpose.msra.mxu0 0.0
    %537 = vmatprep.subr.mxu0 0.0
    %538 = vmatpush1.xpose.msra.mxu0 0.0
    %539 = vmatprep.subr.mxu0 0.0
    %540 = vmatpush1.xpose.msra.mxu0 0.0
    %541 = vmatprep.subr.mxu0 0.0
    %542 = vmatpush1.xpose.msra.mxu0 0.0
    %543 = vmatprep.subr.mxu0 0.0
    %544 = vmatpush1.xpose.msra.mxu0 0.0
    %545 = vmatprep.subr.mxu0 0.0
    %546 = vmatpush1.xpose.msra.mxu0 0.0
    %547 = vmatprep.subr.mxu0 0.0
    %548 = vmatpush1.xpose.msra.mxu0 0.0
    %549 = vmatprep.subr.mxu0 0.0
    %550 = vmatpush1.xpose.msra.mxu0 0.0
    %551 = vmatprep.subr.mxu0 0.0
    %552 = vmatpush1.xpose.msra.mxu0 0.0
    %553 = vmatprep.subr.mxu0 0.0
    %554 = vmatpush1.xpose.msra.mxu0 0.0
    %555 = vmatprep.subr.mxu0 0.0
    %556 = vmatpush1.xpose.msra.mxu0 0.0
    %557 = vmatprep.mubr.f32.mxu0 0.0
    %558 = vmatmul.mubr.f32.gmra.mrb[0].mxu0 %v492
    %v559 = vpop.f32.mrb[0].mxu0
    %v560 = vadd.f32 0.0, %v559
    %v561 = vpop.f32.mrb[0].mxu0
    %562 = vdwg.mxu0
    %v563 = vmul.f32 %v560, 1.2345679
    %564 = vst [vmem:[#allocation7] sm:$0xff] %v563
    // Predicated region
    $region18: #{tpu_custom_call.1} parent=1 // pred_check
      _
    $region19: #{tpu_custom_call.1} parent=1 // pred_check_branch
      %566 = sbr.rel (0) target = $region21
    $region20: #{tpu_custom_call.1} parent=1 // pred_region
      %s568 = ssub.s32 128, 128
      %569 = vsyncadd [#allocation4], %s568
      %s571 = sshll.u32 [#allocation7], 4
      %s572 = int_to_ptr.vmem [resolvable:$true] %s571
      %574 = dma.vmem_to_hbm [thread:$0]  %s572, 128, %s2, [#allocation4]
    $region21: #{tpu_custom_call.1} parent=1 // pred_fallthru
      _
    // Predicated region
    $region22: #{tpu_custom_call.1} parent=1 // pred_check
      _
    $region23: #{tpu_custom_call.1} parent=1 // pred_check_branch
      %576 = sbr.rel (0) target = $region25
    $region24: #{tpu_custom_call.1} parent=1 // pred_region
      %577 = dma.done [#allocation4], 128
    $region25: #{tpu_custom_call.1} parent=1 // pred_fallthru
      _
    %578 = vsyncpa [#allocation3], 1
    %579 = vsyncpa [#allocation6], 1
    %580 = vsyncpa [#allocation4], 1

</llo_original>
